<compile_context>
chip_gen: v5e
topology: v5e:2x2
jax: 0.10.0
libtpu: 0.0.40
codegen_flags: <defaults>
</compile_context>

<pallas_src>
import functools

import jax
import jax.numpy as jnp
from jax import lax
from jax.experimental import pallas as pl
from jax.experimental.pallas import tpu as pltpu


def _actor_kernel(x_ref, w1_ref, b1_ref, w2_ref, b2_ref, wh_ref, bh_ref,
                  out_t_ref, *, action_size, log_std_min, log_std_max):
    """Fused Actor MLP on one batch tile.

    x:   (TB, S)  bf16 (streamed)
    w1:  (S, H)   bf16    b1: (1, H)  f32
    w2:  (H, H)   bf16    b2: (1, H)  f32
    wh:  (2A, H)  bf16    bh: (2A, 1) f32   (mu rows [:A], log_std rows [A:])
    out_t: (2A, TB) f32 -- lane-dense along batch; rows [A:] are clamped.
    """
    x = x_ref[...]                                             # bf16 (TB, S)

    # Hidden layers: bf16 MXU matmuls, f32 accumulate, f32 bias/ReLU.
    h = jnp.dot(x, w1_ref[...], preferred_element_type=jnp.float32) + b1_ref[...]
    h = jnp.maximum(h, 0.0)
    h = jnp.dot(h.astype(jnp.bfloat16), w2_ref[...],
                preferred_element_type=jnp.float32) + b2_ref[...]
    h = jnp.maximum(h, 0.0)                                    # (TB, H) f32

    # Both heads in one MXU pass, contracting over H on both operands
    # ("A @ B^T" form -- native MXU path, no XLU transpose, no h_t temp):
    #   (2A, H) x (TB, H) -> (2A, TB)
    heads = lax.dot_general(
        wh_ref[...], h.astype(jnp.bfloat16),
        dimension_numbers=(((1,), (1,)), ((), ())),
        preferred_element_type=jnp.float32) + bh_ref[...]      # (2A, TB) f32

    # Clamp only the log_std rows (rows >= A); mu rows pass through untouched.
    row = lax.broadcasted_iota(jnp.int32, heads.shape, 0)
    clamped = jnp.clip(heads, log_std_min, log_std_max)
    out_t_ref[...] = jnp.where(row < action_size, heads, clamped)


def _batch_tile(batch):
    """Batch-tile size.

    Whole batch when tiny; otherwise guarantee >= 2 grid steps (so v7x's two
    TensorCores both get work under dimension_semantics=("parallel",)),
    lane-aligned to 128, capped at 8192 rows (~<20 MiB worst-case VMEM
    footprint incl. double-buffered state, intermediates and output tile)."""
    if batch <= 256:
        return batch
    tb = pl.cdiv(batch, 2)
    tb = ((tb + 127) // 128) * 128
    return min(tb, 8192)


def actor_forward(state, params, log_std_min=-20.0, log_std_max=2.0,
                  compute_dtype=jnp.bfloat16):
    """state: (B, S) float -> (mu, log_std), each (B, A) f32.

    MXU operands (state + weights) are cast to `compute_dtype` (bf16 by
    default); accumulation, biases, ReLU, clamp and outputs are f32.  When
    this function is jitted together with the state producer, the bf16 cast
    fuses into the producer and halves the dominant HBM stream.
    """
    w1, b1, w2, b2, w_mu, b_mu, w_ls, b_ls = params
    B, S = state.shape
    A = w_mu.shape[0]

    # Pack the two heads into one (2A, H) weight / (2A, 1) bias.
    w_heads = jnp.concatenate([w_mu, w_ls], axis=0).astype(compute_dtype)
    b_heads = jnp.concatenate([b_mu, b_ls], axis=0).astype(jnp.float32)

    x = state.astype(compute_dtype)
    w1c = w1.astype(compute_dtype)
    w2c = w2.astype(compute_dtype)
    b1c = b1.astype(jnp.float32)
    b2c = b2.astype(jnp.float32)

    TB = _batch_tile(B)
    grid = (pl.cdiv(B, TB),)

    resident = lambda arr: pl.BlockSpec(arr.shape, lambda i: (0, 0))

    kernel = functools.partial(
        _actor_kernel,
        action_size=A,
        log_std_min=float(log_std_min),
        log_std_max=float(log_std_max),
    )

    out_t = pl.pallas_call(
        kernel,
        out_shape=jax.ShapeDtypeStruct((2 * A, B), jnp.float32),
        grid=grid,
        in_specs=[
            pl.BlockSpec((TB, S), lambda i: (i, 0)),   # streamed state tiles
            resident(w1c), resident(b1c),              # weights/biases resident in VMEM
            resident(w2c), resident(b2c),
            resident(w_heads), resident(b_heads),
        ],
        out_specs=pl.BlockSpec((2 * A, TB), lambda i: (0, i)),  # lane-dense along batch
        compiler_params=pltpu.CompilerParams(
            dimension_semantics=("parallel",),          # v7x: shard batch tiles over 2 TCs
            vmem_limit_bytes=32 * 1024 * 1024,          # few-MiB footprint; don't claim v7x's full 64 MiB
        ),
    )(x, w1c, b1c, w2c, b2c, w_heads, b_heads)

    # Free layout plumbing back to the PyTorch (B, A) row-major convention.
    mu = out_t[:A].T
    log_std = out_t[A:].T
    return mu, log_std


def init_actor_params(key, state_size, action_size, hidden_size=32):
    """Mimics torch.nn.Linear default init U(-1/sqrt(fan_in), 1/sqrt(fan_in)).

    fc1/fc2 weights stored as (in, out) for x @ W; head weights kept in torch's
    native (out, in) layout because the kernel computes the heads transposed.
    """
    def uniform(k, shape, fan_in):
        lim = 1.0 / jnp.sqrt(jnp.float32(fan_in))
        return jax.random.uniform(k, shape, jnp.float32, -lim, lim)

    ks = jax.random.split(key, 8)
    w1 = uniform(ks[0], (state_size, hidden_size), state_size)
    b1 = uniform(ks[1], (1, hidden_size), state_size)
    w2 = uniform(ks[2], (hidden_size, hidden_size), hidden_size)
    b2 = uniform(ks[3], (1, hidden_size), hidden_size)
    w_mu = uniform(ks[4], (action_size, hidden_size), hidden_size)
    b_mu = uniform(ks[5], (action_size, 1), hidden_size)
    w_ls = uniform(ks[6], (action_size, hidden_size), hidden_size)
    b_ls = uniform(ks[7], (action_size, 1), hidden_size)
    return (w1, b1, w2, b2, w_mu, b_mu, w_ls, b_ls)


def actor_reference(state, params, log_std_min=-20.0, log_std_max=2.0,
                    compute_dtype=jnp.bfloat16):
    """Plain-JAX reference with the same mixed-precision recipe (bf16 MXU
    operands, f32 accumulate / bias / ReLU / clamp) for tight comparison."""
    w1, b1, w2, b2, w_mu, b_mu, w_ls, b_ls = params
    c = lambda a: a.astype(compute_dtype)
    x = jnp.maximum(jnp.dot(c(state), c(w1),
                            preferred_element_type=jnp.float32) + b1, 0.0)
    x = jnp.maximum(jnp.dot(c(x), c(w2),
                            preferred_element_type=jnp.float32) + b2, 0.0)
    mu = jnp.dot(c(x), c(w_mu).T, preferred_element_type=jnp.float32) + b_mu.T
    log_std = jnp.dot(c(x), c(w_ls).T, preferred_element_type=jnp.float32) + b_ls.T
    return mu, jnp.clip(log_std, log_std_min, log_std_max)


if __name__ == "__main__":
    B, STATE, ACTION, HIDDEN = 2, 16, 8, 32

    key = jax.random.PRNGKey(0)
    k_state, k_params = jax.random.split(key)

    state = jax.random.normal(k_state, (B, STATE), jnp.float32)
    params = init_actor_params(k_params, STATE, ACTION, HIDDEN)

    mu, log_std = actor_forward(state, params)
    jax.block_until_ready((mu, log_std))

    mu_ref, log_std_ref = actor_reference(state, params)
    assert mu.shape == (B, ACTION) and log_std.shape == (B, ACTION)
    assert jnp.allclose(mu, mu_ref, atol=1e-3, rtol=1e-3), (mu, mu_ref)
    assert jnp.allclose(log_std, log_std_ref, atol=1e-3, rtol=1e-3), (log_std, log_std_ref)

    print("KERNEL_OK")
</pallas_src>

<mosaic_0001>
module attributes {stable_mosaic.version = 11 : i64} {
  func.func @_actor_kernel(%arg0: i32, %arg1: memref<2x16xbf16, #tpu.memory_space<vmem>>, %arg2: memref<16x32xbf16, #tpu.memory_space<vmem>>, %arg3: memref<1x32xf32, #tpu.memory_space<vmem>>, %arg4: memref<32x32xbf16, #tpu.memory_space<vmem>>, %arg5: memref<1x32xf32, #tpu.memory_space<vmem>>, %arg6: memref<16x32xbf16, #tpu.memory_space<vmem>>, %arg7: memref<16x1xf32, #tpu.memory_space<vmem>>, %arg8: memref<16x2xf32, #tpu.memory_space<vmem>>) attributes {dimension_semantics = [#tpu.dimension_semantics<parallel>], iteration_bounds = array<i64: 1>, scalar_prefetch = 0 : i64, scratch_operands = 0 : i64, tpu.core_type = #tpu.core_type<tc>, window_params = [{transform_indices = @transform_0, window_bounds = array<i64: 2, 16>}, {pipeline_mode = #tpu.pipeline_mode<synchronous>, transform_indices = @transform_1, window_bounds = array<i64: 16, 32>}, {pipeline_mode = #tpu.pipeline_mode<synchronous>, transform_indices = @transform_2, window_bounds = array<i64: 1, 32>}, {pipeline_mode = #tpu.pipeline_mode<synchronous>, transform_indices = @transform_3, window_bounds = array<i64: 32, 32>}, {pipeline_mode = #tpu.pipeline_mode<synchronous>, transform_indices = @transform_4, window_bounds = array<i64: 1, 32>}, {pipeline_mode = #tpu.pipeline_mode<synchronous>, transform_indices = @transform_5, window_bounds = array<i64: 16, 32>}, {pipeline_mode = #tpu.pipeline_mode<synchronous>, transform_indices = @transform_6, window_bounds = array<i64: 16, 1>}, {transform_indices = @transform_7, window_bounds = array<i64: 16, 2>}]} {
    %c0 = arith.constant 0 : index
    %c0_0 = arith.constant 0 : index
    %0 = vector.load %arg1[%c0, %c0_0] : memref<2x16xbf16, #tpu.memory_space<vmem>>, vector<2x16xbf16>
    %c0_1 = arith.constant 0 : index
    %c0_2 = arith.constant 0 : index
    %1 = vector.load %arg2[%c0_1, %c0_2] : memref<16x32xbf16, #tpu.memory_space<vmem>>, vector<16x32xbf16>
    %cst = arith.constant dense<0.000000e+00> : vector<2x32xf32>
    %2 = tpu.matmul %0, %1, %cst {dimension_numbers = #tpu.dot_dimension_numbers<[1], [0], [0], [1], [0, 0, 1, 1], [], []>} : vector<2x16xbf16>, vector<16x32xbf16>, vector<2x32xf32> -> vector<2x32xf32>
    %c0_3 = arith.constant 0 : index
    %c0_4 = arith.constant 0 : index
    %3 = vector.load %arg3[%c0_3, %c0_4] : memref<1x32xf32, #tpu.memory_space<vmem>>, vector<1x32xf32>
    %4 = vector.broadcast %3 : vector<1x32xf32> to vector<2x32xf32>
    %5 = arith.addf %2, %4 : vector<2x32xf32>
    %cst_5 = arith.constant 0.000000e+00 : f32
    %6 = vector.broadcast %cst_5 : f32 to vector<2x32xf32>
    %7 = arith.maximumf %5, %6 : vector<2x32xf32>
    %8 = arith.truncf %7 : vector<2x32xf32> to vector<2x32xbf16>
    %c0_6 = arith.constant 0 : index
    %c0_7 = arith.constant 0 : index
    %9 = vector.load %arg4[%c0_6, %c0_7] : memref<32x32xbf16, #tpu.memory_space<vmem>>, vector<32x32xbf16>
    %cst_8 = arith.constant dense<0.000000e+00> : vector<2x32xf32>
    %10 = tpu.matmul %8, %9, %cst_8 {dimension_numbers = #tpu.dot_dimension_numbers<[1], [0], [0], [1], [0, 0, 1, 1], [], []>} : vector<2x32xbf16>, vector<32x32xbf16>, vector<2x32xf32> -> vector<2x32xf32>
    %c0_9 = arith.constant 0 : index
    %c0_10 = arith.constant 0 : index
    %11 = vector.load %arg5[%c0_9, %c0_10] : memref<1x32xf32, #tpu.memory_space<vmem>>, vector<1x32xf32>
    %12 = vector.broadcast %11 : vector<1x32xf32> to vector<2x32xf32>
    %13 = arith.addf %10, %12 : vector<2x32xf32>
    %cst_11 = arith.constant 0.000000e+00 : f32
    %14 = vector.broadcast %cst_11 : f32 to vector<2x32xf32>
    %15 = arith.maximumf %13, %14 : vector<2x32xf32>
    %c0_12 = arith.constant 0 : index
    %c0_13 = arith.constant 0 : index
    %16 = vector.load %arg6[%c0_12, %c0_13] : memref<16x32xbf16, #tpu.memory_space<vmem>>, vector<16x32xbf16>
    %17 = arith.truncf %15 : vector<2x32xf32> to vector<2x32xbf16>
    %cst_14 = arith.constant dense<0.000000e+00> : vector<16x2xf32>
    %18 = tpu.matmul %16, %17, %cst_14 {dimension_numbers = #tpu.dot_dimension_numbers<[1], [1], [0], [0], [0, 0, 1, 0], [], []>} : vector<16x32xbf16>, vector<2x32xbf16>, vector<16x2xf32> -> vector<16x2xf32>
    %c0_15 = arith.constant 0 : index
    %c0_16 = arith.constant 0 : index
    %19 = vector.load %arg7[%c0_15, %c0_16] : memref<16x1xf32, #tpu.memory_space<vmem>>, vector<16x1xf32>
    %20 = vector.broadcast %19 : vector<16x1xf32> to vector<16x2xf32>
    %21 = arith.addf %18, %20 : vector<16x2xf32>
    %22 = tpu.iota {dimensions = array<i32: 0>} : vector<16x2xi32>
    %cst_17 = arith.constant -2.000000e+01 : f32
    %cst_18 = arith.constant 2.000000e+00 : f32
    %23 = vector.broadcast %cst_17 : f32 to vector<16x2xf32>
    %24 = arith.maximumf %23, %21 : vector<16x2xf32>
    %25 = vector.broadcast %cst_18 : f32 to vector<16x2xf32>
    %26 = arith.minimumf %25, %24 : vector<16x2xf32>
    %c8_i32 = arith.constant 8 : i32
    %27 = vector.broadcast %c8_i32 : i32 to vector<16x2xi32>
    %28 = arith.cmpi slt, %22, %27 : vector<16x2xi32>
    %29 = arith.select %28, %21, %26 : vector<16x2xi1>, vector<16x2xf32>
    %c0_19 = arith.constant 0 : index
    %c0_20 = arith.constant 0 : index
    %30 = vector.load %arg8[%c0_19, %c0_20] : memref<16x2xf32, #tpu.memory_space<vmem>>, vector<16x2xf32>
    tpu.vector_store %arg8[%c0_19, %c0_20], %29 {strides = array<i32>} : memref<16x2xf32, #tpu.memory_space<vmem>>, vector<16x2xf32>,
    return
  }
  func.func @transform_0(%arg0: i32) -> (i32, i32) {
    %c0_i32 = arith.constant 0 : i32
    %c0_i32_0 = arith.constant 0 : i32
    return %arg0, %c0_i32 : i32, i32
  }
  func.func @transform_1(%arg0: i32) -> (i32, i32) {
    %c0_i32 = arith.constant 0 : i32
    %c0_i32_0 = arith.constant 0 : i32
    %c0_i32_1 = arith.constant 0 : i32
    return %c0_i32, %c0_i32_0 : i32, i32
  }
  func.func @transform_2(%arg0: i32) -> (i32, i32) {
    %c0_i32 = arith.constant 0 : i32
    %c0_i32_0 = arith.constant 0 : i32
    %c0_i32_1 = arith.constant 0 : i32
    return %c0_i32, %c0_i32_0 : i32, i32
  }
  func.func @transform_3(%arg0: i32) -> (i32, i32) {
    %c0_i32 = arith.constant 0 : i32
    %c0_i32_0 = arith.constant 0 : i32
    %c0_i32_1 = arith.constant 0 : i32
    return %c0_i32, %c0_i32_0 : i32, i32
  }
  func.func @transform_4(%arg0: i32) -> (i32, i32) {
    %c0_i32 = arith.constant 0 : i32
    %c0_i32_0 = arith.constant 0 : i32
    %c0_i32_1 = arith.constant 0 : i32
    return %c0_i32, %c0_i32_0 : i32, i32
  }
  func.func @transform_5(%arg0: i32) -> (i32, i32) {
    %c0_i32 = arith.constant 0 : i32
    %c0_i32_0 = arith.constant 0 : i32
    %c0_i32_1 = arith.constant 0 : i32
    return %c0_i32, %c0_i32_0 : i32, i32
  }
  func.func @transform_6(%arg0: i32) -> (i32, i32) {
    %c0_i32 = arith.constant 0 : i32
    %c0_i32_0 = arith.constant 0 : i32
    %c0_i32_1 = arith.constant 0 : i32
    return %c0_i32, %c0_i32_0 : i32, i32
  }
  func.func @transform_7(%arg0: i32) -> (i32, i32) {
    %c0_i32 = arith.constant 0 : i32
    %c0_i32_0 = arith.constant 0 : i32
    return %c0_i32, %arg0 : i32, i32
  }
}

</mosaic_0001>

<llo_original>
// kernel: tpu_custom_call.1
$region0: #{tpu_custom_call.1}
  #allocation0 [shape = 'u32[]', space=smem, size = 0x4, offset = 0x4, fixed_abs, tag = 'smem constant byte address 0x4 - core index']
  #allocation1 [shape = 'u32[72,128]{1,0:T(1,128)}', space=vmem, size = 0x9000, scoped, tag = 'internal scratch']
  %s0 = inlined_call_operand.vmem [shape: bf16[2,16], index: 0, kind: input, shape index: {}]
  %s1 = inlined_call_operand.hbm [shape: bf16[16,32], index: 1, kind: input, shape index: {}]
  %s2 = inlined_call_operand.hbm [shape: f32[1,32], index: 2, kind: input, shape index: {}]
  %s3 = inlined_call_operand.vmem [shape: bf16[32,32], index: 3, kind: input, shape index: {}]
  %s4 = inlined_call_operand.vmem [shape: f32[1,32], index: 4, kind: input, shape index: {}]
  %s5 = inlined_call_operand.hbm [shape: bf16[16,32], index: 5, kind: input, shape index: {}]
  %s6 = inlined_call_operand.vmem [shape: f32[16,1], index: 6, kind: input, shape index: {}]
  %s7 = inlined_call_operand.vmem [shape: f32[16,2], index: 7, kind: output, shape index: {}]
  %s8 = sld [smem:[#allocation0]]
  $region50: #{tpu_custom_call.1} parent=0
    _
  %s10 = ssub.s32 1, %s8
  %s11 = scalar_select 0, %s10, %s8
  $region1: #{tpu_custom_call.1} parent=0
    #allocation2 [shape = 'u8[4096]{0}', space=vmem, size = 0x1000, scoped, tag = 'input window, operand 1, single buffered']
    #allocation3 [shape = 's32[1]{0}', space=sflag, size = 0x4, scoped, tag = 'scoped memory for tpu_custom_call.1']
    #allocation4 [shape = 'u8[512]{0}', space=vmem, size = 0x400, scoped, tag = 'input window, operand 2, single buffered']
    #allocation5 [shape = 's32[1]{0}', space=sflag, size = 0x4, scoped, tag = 'scoped memory for tpu_custom_call.1']
    #allocation6 [shape = 'u8[4096]{0}', space=vmem, size = 0x1000, scoped, tag = 'input window, operand 5, single buffered']
    %12 = vsyncpa [#allocation3], 0
    %13 = vsyncpa [#allocation5], 0
    // Predicated region
    $region2: #{tpu_custom_call.1} parent=1 // pred_check
      _
    $region3: #{tpu_custom_call.1} parent=1 // pred_check_branch
      %15 = sbr.rel (0) target = $region5
    $region4: #{tpu_custom_call.1} parent=1 // pred_region
      _
    $region5: #{tpu_custom_call.1} parent=1 // pred_fallthru
      _
    // Predicated region
    $region6: #{tpu_custom_call.1} parent=1 // pred_check
      _
    $region7: #{tpu_custom_call.1} parent=1 // pred_check_branch
      %17 = sbr.rel (0) target = $region9
    $region8: #{tpu_custom_call.1} parent=1 // pred_region
      %19 = vsyncadd [#allocation3], 0
      %s20 = sshll.u32 %s1, 4
      %s21 = int_to_ptr.hbm [resolvable:$true] %s20
      %s22 = sshll.u32 [#allocation2], 4
      %s23 = int_to_ptr.vmem [resolvable:$true] %s22
      %28 = dma.hbm_to_vmem [thread:$0]  %s21, 128, %s23, [#allocation3], 64, 64, 4
    $region9: #{tpu_custom_call.1} parent=1 // pred_fallthru
      _
    // Predicated region
    $region10: #{tpu_custom_call.1} parent=1 // pred_check
      _
    $region11: #{tpu_custom_call.1} parent=1 // pred_check_branch
      %30 = sbr.rel (0) target = $region13
    $region12: #{tpu_custom_call.1} parent=1 // pred_region
      %32 = vsyncadd [#allocation5], 0
      %s34 = sshll.u32 %s2, 4
      %s35 = int_to_ptr.hbm [resolvable:$true] %s34
      %s36 = sshll.u32 [#allocation4], 4
      %s37 = int_to_ptr.vmem [resolvable:$true] %s36
      %39 = dma.hbm_to_vmem [thread:$0]  %s35, 16, %s37, [#allocation5]
    $region13: #{tpu_custom_call.1} parent=1 // pred_fallthru
      _
    // Predicated region
    $region14: #{tpu_custom_call.1} parent=1 // pred_check
      _
    $region15: #{tpu_custom_call.1} parent=1 // pred_check_branch
      %41 = sbr.rel (0) target = $region17
    $region16: #{tpu_custom_call.1} parent=1 // pred_region
      _
    $region17: #{tpu_custom_call.1} parent=1 // pred_fallthru
      _
    // Predicated region
    $region18: #{tpu_custom_call.1} parent=1 // pred_check
      _
    $region19: #{tpu_custom_call.1} parent=1 // pred_check_branch
      %43 = sbr.rel (0) target = $region21
    $region20: #{tpu_custom_call.1} parent=1 // pred_region
      _
    $region21: #{tpu_custom_call.1} parent=1 // pred_fallthru
      _
    // Predicated region
    $region22: #{tpu_custom_call.1} parent=1 // pred_check
      _
    $region23: #{tpu_custom_call.1} parent=1 // pred_check_branch
      %45 = sbr.rel (0) target = $region25
    $region24: #{tpu_custom_call.1} parent=1 // pred_region
      %47 = vsyncadd [#allocation5], 0
      %s48 = sshll.u32 %s5, 4
      %s49 = int_to_ptr.hbm [resolvable:$true] %s48
      %s50 = sshll.u32 [#allocation6], 4
      %s51 = int_to_ptr.vmem [resolvable:$true] %s50
      %56 = dma.hbm_to_vmem [thread:$0]  %s49, 128, %s51, [#allocation5], 64, 64, 4
    $region25: #{tpu_custom_call.1} parent=1 // pred_fallthru
      _
    // Predicated region
    $region26: #{tpu_custom_call.1} parent=1 // pred_check
      _
    $region27: #{tpu_custom_call.1} parent=1 // pred_check_branch
      %58 = sbr.rel (0) target = $region29
    $region28: #{tpu_custom_call.1} parent=1 // pred_region
      _
    $region29: #{tpu_custom_call.1} parent=1 // pred_fallthru
      _
    // Predicated region
    $region30: #{tpu_custom_call.1} parent=1 // pred_check
      _
    $region31: #{tpu_custom_call.1} parent=1 // pred_check_branch
      %60 = sbr.rel (0) target = $region33
    $region32: #{tpu_custom_call.1} parent=1 // pred_region
      %62 = dma.done [#allocation3], 128
    $region33: #{tpu_custom_call.1} parent=1 // pred_fallthru
      _
    // Predicated region
    $region34: #{tpu_custom_call.1} parent=1 // pred_check
      _
    $region35: #{tpu_custom_call.1} parent=1 // pred_check_branch
      %64 = sbr.rel (0) target = $region37
    $region36: #{tpu_custom_call.1} parent=1 // pred_region
      %66 = dma.done [#allocation5], 16
    $region37: #{tpu_custom_call.1} parent=1 // pred_fallthru
      _
    // Predicated region
    $region38: #{tpu_custom_call.1} parent=1 // pred_check
      _
    $region39: #{tpu_custom_call.1} parent=1 // pred_check_branch
      %68 = sbr.rel (0) target = $region41
    $region40: #{tpu_custom_call.1} parent=1 // pred_region
      %70 = dma.done [#allocation5], 128
    $region41: #{tpu_custom_call.1} parent=1 // pred_fallthru
      _
    %v72 = vld [vmem:[%s0] sm:$0x1]
    %v73 = vld [vmem:[#allocation2] sm:$0xf]
    %v74 = vld [vmem:[#allocation2 + $0x4] sm:$0xf]
    %v75 = vld [vmem:[#allocation4] sm:$0x1]
    %v77 = vperm.slane %v75, 0
    %v81 = vunpack.c.l.b16 %v73
    %v82 = vunpack.c.l.b16 %v74
    %v83 = vpack.c.b16 %v82, %v81
    %vm85 = vcmask 130048
    %v87 = vsel %vm85, %v72, 0
    %89 = vmatpush.bf16.msra.mxu0 0
    %90 = vmatpush.bf16.msra.mxu0 0
    %91 = vmatpush.bf16.msra.mxu0 0
    %92 = vmatpush.bf16.msra.mxu0 0
    %93 = vmatpush.bf16.msra.mxu0 0
    %94 = vmatpush.bf16.msra.mxu0 0
    %95 = vmatpush.bf16.msra.mxu0 0
    %96 = vmatpush.bf16.msra.mxu0 %v83
    %97 = vmatmul.bf16.gmra.mxu0 %v87
    %v98 = vpop.f32.mrf.mxu0
    %v99 = vadd.f32 %v77, %v98
    %v100 = vpop.f32.mrf.mxu0
    %101 = vdwg.mxu0
    %v102 = vmax.f32 %v99, 0.0
    %v103 = vpack.c.bf16 %v102, %v102
    %v104 = vld [vmem:[%s3] sm:$0xf]
    %v105 = vld [vmem:[%s3 + $0x4] sm:$0xf]
    %v106 = vld [vmem:[%s3 + $0x8] sm:$0xf]
    %v107 = vld [vmem:[%s3 + $0xc] sm:$0xf]
    %v108 = vld [vmem:[%s4] sm:$0x1]
    %v110 = vperm.slane %v108, 0
    %v116 = vunpack.c.l.b16 %v104
    %v117 = vunpack.c.l.b16 %v105
    %v118 = vunpack.c.l.b16 %v106
    %v119 = vunpack.c.l.b16 %v107
    %v120 = vpack.c.b16 %v117, %v116
    %v121 = vpack.c.b16 %v119, %v118
    %vm124 = vcmask 261120
    %v126 = vsel %vm124, %v103, 0
    %128 = vmatpush.bf16.msra.mxu0 0
    %129 = vmatpush.bf16.msra.mxu0 0
    %130 = vmatpush.bf16.msra.mxu0 0
    %131 = vmatpush.bf16.msra.mxu0 0
    %132 = vmatpush.bf16.msra.mxu0 0
    %133 = vmatpush.bf16.msra.mxu0 0
    %134 = vmatpush.bf16.msra.mxu0 %v121
    %135 = vmatpush.bf16.msra.mxu0 %v120
    %136 = vmatmul.bf16.gmra.mxu0 %v126
    %v137 = vpop.f32.mrf.mxu0
    %v138 = vadd.f32 %v110, %v137
    %v139 = vpop.f32.mrf.mxu0
    %140 = vdwg.mxu0
    %v141 = vmax.f32 %v138, 0.0
    %v142 = vld [vmem:[#allocation6] sm:$0xf]
    %v143 = vld [vmem:[#allocation6 + $0x4] sm:$0xf]
    %v144 = vpack.c.bf16 %v141, %v141
    %v145 = vld [vmem:[%s6] sm:$0xff]
    %v146 = vld [vmem:[%s6 + $0x8] sm:$0xff]
    %148 = vset.pattern.permute.xlu0 0
    %149 = vperm.xlu0 %148, %v145
    %v150 = vpop.permute.xlu0 %149
    %153 = vset.pattern.permute.xlu0 0
    %154 = vperm.xlu0 %153, %v146
    %v155 = vpop.permute.xlu0 %154
    %v159 = vunpack.c.l.b16 %v142
    %v160 = vunpack.c.l.b16 %v143
    %v161 = vpack.c.b16 %v160, %v159
    %v163 = vsel %vm124, %v161, 0
    %v166 = vsel %vm124, %v144, 0
    %168 = vmatpush.bf16.xpose.msra.mxu0 0
    %169 = vmatpush.bf16.xpose.msra.mxu0 0
    %170 = vmatpush.bf16.xpose.msra.mxu0 0
    %171 = vmatpush.bf16.xpose.msra.mxu0 0
    %172 = vmatpush.bf16.xpose.msra.mxu0 0
    %173 = vmatpush.bf16.xpose.msra.mxu0 0
    %174 = vmatpush.bf16.xpose.msra.mxu0 0
    %175 = vmatpush.bf16.xpose.msra.mxu0 %v166
    %176 = vmatmul.bf16.gmra.mxu0 %v163
    %v177 = vpop.f32.mrf.mxu0
    %v178 = vadd.f32 %v150, %v177
    %v179 = vpop.f32.mrf.mxu0
    %v180 = vadd.f32 %v155, %v179
    %181 = vdwg.mxu0
    %v182 = vlaneseq
    %v183 = vshrl.u32 %v182, 7
    %v184 = vadd.s32 %v183, 8
    %v185 = vmax.f32 %v178, -20.0
    %v186 = vmax.f32 %v180, -20.0
    %v187 = vmin.f32 %v185, 2.0
    %v188 = vmin.f32 %v186, 2.0
    %vm189 = vcmp.lt.s32.totalorder %v183, 8
    %vm190 = vcmp.lt.s32.totalorder %v184, 8
    %v191 = vsel %vm189, %v178, %v187
    %v192 = vsel %vm190, %v180, %v188
    %vm193 = vcmask 15360
    %194 = vst.msk [vmem:[%s7] sm:$0xff] %vm193, %v191
    %195 = vst.msk [vmem:[%s7 + $0x8] sm:$0xff] %vm193, %v192
    // Predicated region
    $region42: #{tpu_custom_call.1} parent=1 // pred_check
      _
    $region43: #{tpu_custom_call.1} parent=1 // pred_check_branch
      %197 = sbr.rel (0) target = $region45
    $region44: #{tpu_custom_call.1} parent=1 // pred_region
      _
    $region45: #{tpu_custom_call.1} parent=1 // pred_fallthru
      _
    // Predicated region
    $region46: #{tpu_custom_call.1} parent=1 // pred_check
      _
    $region47: #{tpu_custom_call.1} parent=1 // pred_check_branch
      %199 = sbr.rel (0) target = $region49
    $region48: #{tpu_custom_call.1} parent=1 // pred_region
      _
    $region49: #{tpu_custom_call.1} parent=1 // pred_fallthru
      _
    %200 = vsyncpa [#allocation3], 1
    %201 = vsyncpa [#allocation5], 1

</llo_original>
